<compile_context>
chip_gen: v6e
topology: v6e:2x2x1
jax: 0.10.0
libtpu: 0.0.40
codegen_flags: <defaults>
</compile_context>

<pallas_src>
import math
import functools

import jax
import jax.numpy as jnp
from jax.experimental import pallas as pl
from jax.experimental.pallas import tpu as pltpu


# ----------------------------------------------------------------------------
# Small helpers (trace-time Python)
# ----------------------------------------------------------------------------
def _round_up(a, b):
    return ((a + b - 1) // b) * b


def _vmem_capacity_bytes():
    try:
        return int(pltpu.get_tpu_info().vmem_capacity_bytes)
    except Exception:
        return 128 << 20  # v5e / v6e default


def _pick_gate_tile(n_rows):
    for cand in (1024, 512, 256, 128, 64, 32, 16, 8):
        if n_rows % cand == 0:
            return cand
    return n_rows  # full-extent block (always legal)


def _pick_row_tile(n_expanded, num_experts):
    # v5e/v6e (128 MiB VMEM): big tiles to stay MXU-bound while re-streaming
    # weights; v7x (64 MiB): cap at 256.
    hi = 1024 if _vmem_capacity_bytes() >= (96 << 20) else 256
    avg_group = max(n_expanded // max(num_experts, 1), 8)
    for cand in (1024, 768, 512, 384, 256, 128, 64, 32, 16, 8):
        if cand <= hi and cand <= avg_group:
            return cand
    return 8


def _pick_hidden_tile(hidden_dim):
    if hidden_dim <= 1024:
        return hidden_dim
    for cand in (1024, 512, 256, 128):
        if hidden_dim % cand == 0:
            return cand
    return hidden_dim


def _expert_vmem_limit_bytes(tm, th, dim):
    x_b = 2 * tm * dim * 2                      # x tile, dbl-buffered, bf16
    out_b = 2 * tm * dim * 4                    # resident f32 output tile
    w_b = 2 * (2 * dim * th + th * dim) * 2     # w1,w3,w2 tiles, dbl-buf, bf16
    wt_b = 2 * tm * 4                           # combine-weight column
    live = 3 * tm * th * 4 + tm * dim * 4       # h1,h3,act + y intermediates
    est = int((x_b + out_b + w_b + wt_b + live) * 1.5) + (4 << 20)
    cap = _vmem_capacity_bytes()
    return max(32 << 20, min(est, int(cap * 0.9)))


# ----------------------------------------------------------------------------
# Kernel 1: gate projection (+bias) fused with softmax -> router probabilities
# (kept in f32 so routing matches the f32 reference; O(N*E), tiny)
# ----------------------------------------------------------------------------
def gate_kernel(x_ref, wg_ref, bg_ref, p_ref):
    logits = jnp.dot(x_ref[...], wg_ref[...],
                     preferred_element_type=jnp.float32) + bg_ref[...]
    m = jnp.max(logits, axis=-1, keepdims=True)
    e = jnp.exp(logits - m)
    denom = jnp.sum(e, axis=-1, keepdims=True)
    p_ref[...] = e * pl.reciprocal(denom, approx=False)


def pallas_gate(x, wg, bg, *, tm):
    N, D = x.shape
    E = wg.shape[1]
    return pl.pallas_call(
        gate_kernel,
        out_shape=jax.ShapeDtypeStruct((N, E), jnp.float32),
        grid=(N // tm,),
        in_specs=[
            pl.BlockSpec((tm, D), lambda i: (i, 0)),
            pl.BlockSpec((D, E), lambda i: (0, 0)),
            pl.BlockSpec((1, E), lambda i: (0, 0)),
        ],
        out_specs=pl.BlockSpec((tm, E), lambda i: (i, 0)),
        compiler_params=pltpu.CompilerParams(
            dimension_semantics=("parallel",)),
    )(x, wg, bg.reshape(1, E))


# ----------------------------------------------------------------------------
# Kernel 2: grouped expert FFN over expert-sorted token blocks.
#   grid = (row blocks, hidden chunks); each row block belongs to exactly one
#   expert (groups are padded to tm), selected via the prefetched block->expert
#   map in the weight index_maps.  Hidden axis is the reduction axis; partial
#   y chunks accumulate directly into the resident f32 o_ref.  The per-row
#   combine weight (0.0 for padding rows) is applied on the last hidden chunk.
# ----------------------------------------------------------------------------
def grouped_expert_kernel(be_ref, x_ref, w1_ref, w3_ref, w2_ref, wt_ref, o_ref):
    # be_ref (SMEM block->expert map) is only used by the index_maps.
    h_idx = pl.program_id(1)
    n_h = pl.num_programs(1)

    x = x_ref[...]                                                  # (tm, D) bf16
    h1 = jnp.dot(x, w1_ref[0], preferred_element_type=jnp.float32)  # (tm, th)
    h3 = jnp.dot(x, w3_ref[0], preferred_element_type=jnp.float32)  # (tm, th)
    act = jnp.square(jnp.maximum(h1, 0.0)) * h3                     # f32, VPU
    y = jnp.dot(act.astype(jnp.bfloat16), w2_ref[0],
                preferred_element_type=jnp.float32)                  # (tm, D) f32

    @pl.when(h_idx == 0)
    def _():
        o_ref[...] = y

    @pl.when(h_idx > 0)
    def _():
        o_ref[...] = o_ref[...] + y

    @pl.when(h_idx == n_h - 1)
    def _():
        o_ref[...] = o_ref[...] * wt_ref[...]   # (tm,1) combine weight broadcast


def pallas_grouped_experts(block_expert, x_sorted, w1, w3, w2, row_weight,
                           *, tm, th):
    P, D = x_sorted.shape
    E, _, H = w1.shape
    nb = P // tm
    nh = H // th
    grid_spec = pltpu.PrefetchScalarGridSpec(
        num_scalar_prefetch=1,
        grid=(nb, nh),
        in_specs=[
            pl.BlockSpec((tm, D), lambda b, h, be: (b, 0)),          # x block
            pl.BlockSpec((1, D, th), lambda b, h, be: (be[b], 0, h)),  # w1[e]
            pl.BlockSpec((1, D, th), lambda b, h, be: (be[b], 0, h)),  # w3[e]
            pl.BlockSpec((1, th, D), lambda b, h, be: (be[b], h, 0)),  # w2[e]
            pl.BlockSpec((tm, 1), lambda b, h, be: (b, 0)),          # weights
        ],
        out_specs=pl.BlockSpec((tm, D), lambda b, h, be: (b, 0)),
    )
    return pl.pallas_call(
        grouped_expert_kernel,
        grid_spec=grid_spec,
        out_shape=jax.ShapeDtypeStruct((P, D), jnp.float32),
        compiler_params=pltpu.CompilerParams(
            dimension_semantics=("parallel", "arbitrary"),
            vmem_limit_bytes=_expert_vmem_limit_bytes(tm, th, D)),
    )(block_expert, x_sorted, w1, w3, w2, row_weight)


# ----------------------------------------------------------------------------
# Routing / grouping glue (O(N*E), plain XLA): top-2 select + renormalize,
# sort assignments by expert, pad each group to the row tile, build the
# block->expert map for scalar prefetch.
# ----------------------------------------------------------------------------
def build_group_metadata(top2_i, top2_p, num_tokens, num_experts, tm):
    top_k = top2_i.shape[1]
    n_exp = num_tokens * top_k                          # static (= 2N)

    flat_expert = top2_i.reshape(-1).astype(jnp.int32)
    flat_weight = top2_p.reshape(-1).astype(jnp.float32)
    flat_token = jnp.repeat(jnp.arange(num_tokens, dtype=jnp.int32), top_k)

    order = jnp.argsort(flat_expert)                    # stable by default
    s_expert = flat_expert[order]
    s_token = flat_token[order]
    s_weight = flat_weight[order]

    counts = jnp.bincount(flat_expert, length=num_experts).astype(jnp.int32)
    padded = ((counts + tm - 1) // tm) * tm             # per-group padded sizes
    group_start = jnp.concatenate(
        [jnp.zeros((1,), jnp.int32), jnp.cumsum(padded)[:-1].astype(jnp.int32)])
    count_start = jnp.concatenate(
        [jnp.zeros((1,), jnp.int32), jnp.cumsum(counts)[:-1].astype(jnp.int32)])

    rank = jnp.arange(n_exp, dtype=jnp.int32) - count_start[s_expert]
    dest = group_start[s_expert] + rank                 # padded-row destination

    # Static upper bound on padded rows (multiple of tm).
    P = _round_up(n_exp, tm) + num_experts * tm
    token_idx = jnp.zeros((P,), jnp.int32).at[dest].set(s_token)
    row_weight = jnp.zeros((P,), jnp.float32).at[dest].set(s_weight)

    nb = P // tm
    group_end = group_start + padded
    block_first_row = jnp.arange(nb, dtype=jnp.int32) * tm
    block_expert = jnp.sum(
        (block_first_row[:, None] >= group_end[None, :]).astype(jnp.int32),
        axis=-1)
    block_expert = jnp.minimum(block_expert, num_experts - 1).astype(jnp.int32)
    return token_idx, row_weight, block_expert, P


# ----------------------------------------------------------------------------
# Full forward pass (matches FFN.forward)
# ----------------------------------------------------------------------------
@functools.partial(jax.jit, static_argnames=("num_experts",))
def moe_ffn_forward(x, params, num_experts):
    B, S, D = x.shape
    N = B * S
    H = params["w1"].shape[-1]
    x_flat = x.reshape(N, D)

    # 1) Router (f32 gate + softmax in Pallas, top-2 + renormalize in XLA).
    probs = pallas_gate(x_flat.astype(jnp.float32),
                        params["wg"].astype(jnp.float32),
                        params["bg"].astype(jnp.float32),
                        tm=_pick_gate_tile(N))                     # (N, E)
    top2_p, top2_i = jax.lax.top_k(probs, 2)
    top2_p = top2_p / jnp.sum(top2_p, axis=-1, keepdims=True)

    # 2) Group tokens by expert (padded to the row tile).
    tm = _pick_row_tile(2 * N, num_experts)
    th = _pick_hidden_tile(H)
    token_idx, row_weight, block_expert, P = build_group_metadata(
        top2_i, top2_p, N, num_experts, tm)

    # Gather tokens into expert order, casting to bf16 in the same pass.
    x_sorted = x_flat[token_idx].astype(jnp.bfloat16)              # (P, D)

    # 3) Grouped expert FFN (combine weights applied in-kernel).
    y_sorted = pallas_grouped_experts(
        block_expert, x_sorted,
        params["w1"].astype(jnp.bfloat16),
        params["w3"].astype(jnp.bfloat16),
        params["w2"].astype(jnp.bfloat16),
        row_weight.reshape(P, 1),
        tm=tm, th=th)                                              # (P, D) f32

    # 4) Scatter-add back to token order (padding rows have weight 0).
    out = jnp.zeros((N, D), jnp.float32).at[token_idx].add(y_sorted)
    return out.reshape(B, S, D)


# ----------------------------------------------------------------------------
# Pure-JAX f32 reference (mirrors the PyTorch loop; dense-equivalent form)
# ----------------------------------------------------------------------------
def reference_ffn(x, params, num_experts):
    B, S, D = x.shape
    x_flat = x.reshape(-1, D)
    logits = x_flat @ params["wg"] + params["bg"]
    probs = jax.nn.softmax(logits, axis=-1)
    top2_p, top2_i = jax.lax.top_k(probs, 2)
    top2_p = top2_p / jnp.sum(top2_p, axis=-1, keepdims=True)
    out = jnp.zeros_like(x_flat)
    for e in range(num_experts):
        sel = (top2_i == e)
        w = jnp.sum(jnp.where(sel, top2_p, 0.0), axis=-1, keepdims=True)
        h = jnp.maximum(x_flat @ params["w1"][e], 0.0) ** 2 \
            * (x_flat @ params["w3"][e])
        y = h @ params["w2"][e]
        out = out + w * y
    return out.reshape(B, S, D)


if __name__ == "__main__":
    # Small shapes consistent with the module
    batch, seq_len = 2, 8
    dim, hidden_dim, num_experts = 32, 64, 4

    key = jax.random.PRNGKey(0)
    kx, kg, kb, k1, k2, k3 = jax.random.split(key, 6)

    # nn.Linear stores (out, in); weights kept pre-transposed as (in, out) so
    # kernels compute x @ W directly.
    s_d = 1.0 / math.sqrt(dim)
    s_h = 1.0 / math.sqrt(hidden_dim)
    params = {
        "wg": jax.random.uniform(kg, (dim, num_experts), jnp.float32, -s_d, s_d),
        "bg": jax.random.uniform(kb, (num_experts,), jnp.float32, -s_d, s_d),
        "w1": jax.random.uniform(k1, (num_experts, dim, hidden_dim),
                                 jnp.float32, -s_d, s_d),
        "w3": jax.random.uniform(k3, (num_experts, dim, hidden_dim),
                                 jnp.float32, -s_d, s_d),
        "w2": jax.random.uniform(k2, (num_experts, hidden_dim, dim),
                                 jnp.float32, -s_h, s_h),
    }

    x = jax.random.normal(kx, (batch, seq_len, dim), dtype=jnp.float32)

    out = moe_ffn_forward(x, params, num_experts)
    out = jax.block_until_ready(out)

    ref = reference_ffn(x, params, num_experts)
    assert out.shape == (batch, seq_len, dim)
    # bf16 MXU operands with f32 accumulation -> loose tolerance vs f32 ref
    assert jnp.allclose(out, ref, atol=3e-2, rtol=3e-2), "mismatch vs reference"

    print("KERNEL_OK")
</pallas_src>

<mosaic_0001>
module attributes {stable_mosaic.version = 11 : i64} {
  func.func private @main(%arg0: i32) attributes {dimension_semantics = [#tpu.dimension_semantics<core_parallel>], iteration_bounds = array<i64: 2>, tpu.core_type = #tpu.core_type<sc_scalar_subcore>, window_params = []} {
    return
  }
}

module attributes {stable_mosaic.version = 11 : i64} {
  func.func private @main(%arg0: i32) attributes {dimension_semantics = [#tpu.dimension_semantics<core_parallel>], iteration_bounds = array<i64: 2>, tpu.core_type = #tpu.core_type<sc_scalar_subcore>, window_params = []} {
    return
  }
}

module attributes {stable_mosaic.version = 11 : i64} {
  func.func @gate_kernel(%arg0: i32, %arg1: memref<16x32xf32, #tpu.memory_space<vmem>>, %arg2: memref<32x4xf32, #tpu.memory_space<vmem>>, %arg3: memref<1x4xf32, #tpu.memory_space<vmem>>, %arg4: memref<16x4xf32, #tpu.memory_space<vmem>>) attributes {dimension_semantics = [#tpu.dimension_semantics<parallel>], iteration_bounds = array<i64: 1>, scalar_prefetch = 0 : i64, scratch_operands = 0 : i64, tpu.core_type = #tpu.core_type<tc>, window_params = [{transform_indices = @transform_0, window_bounds = array<i64: 16, 32>}, {pipeline_mode = #tpu.pipeline_mode<synchronous>, transform_indices = @transform_1, window_bounds = array<i64: 32, 4>}, {pipeline_mode = #tpu.pipeline_mode<synchronous>, transform_indices = @transform_2, window_bounds = array<i64: 1, 4>}, {transform_indices = @transform_3, window_bounds = array<i64: 16, 4>}]} {
    %c0 = arith.constant 0 : index
    %c0_0 = arith.constant 0 : index
    %0 = vector.load %arg1[%c0, %c0_0] : memref<16x32xf32, #tpu.memory_space<vmem>>, vector<16x32xf32>
    %c0_1 = arith.constant 0 : index
    %c0_2 = arith.constant 0 : index
    %1 = vector.load %arg2[%c0_1, %c0_2] : memref<32x4xf32, #tpu.memory_space<vmem>>, vector<32x4xf32>
    %cst = arith.constant dense<0.000000e+00> : vector<16x4xf32>
    %2 = tpu.matmul %0, %1, %cst {dimension_numbers = #tpu.dot_dimension_numbers<[1], [0], [0], [1], [0, 0, 1, 1], [], []>} : vector<16x32xf32>, vector<32x4xf32>, vector<16x4xf32> -> vector<16x4xf32>
    %c0_3 = arith.constant 0 : index
    %c0_4 = arith.constant 0 : index
    %3 = vector.load %arg3[%c0_3, %c0_4] : memref<1x4xf32, #tpu.memory_space<vmem>>, vector<1x4xf32>
    %4 = vector.broadcast %3 : vector<1x4xf32> to vector<16x4xf32>
    %5 = arith.addf %2, %4 : vector<16x4xf32>
    %cst_5 = arith.constant dense<0xFF800000> : vector<16xf32>
    %6 = vector.multi_reduction <maximumf>, %5, %cst_5 [1] : vector<16x4xf32> to vector<16xf32>
    %7 = vector.shape_cast %6 : vector<16xf32> to vector<16x1xf32>
    %8 = vector.broadcast %7 : vector<16x1xf32> to vector<16x4xf32>
    %9 = arith.subf %5, %8 : vector<16x4xf32>
    %10 = math.exp %9 : vector<16x4xf32>
    %cst_6 = arith.constant dense<0.000000e+00> : vector<16xf32>
    %11 = vector.multi_reduction <add>, %10, %cst_6 [1] : vector<16x4xf32> to vector<16xf32>
    %12 = vector.shape_cast %11 : vector<16xf32> to vector<16x1xf32>
    %13 = tpu.reciprocal %12 : vector<16x1xf32> -> vector<16x1xf32>
    %14 = vector.broadcast %13 : vector<16x1xf32> to vector<16x4xf32>
    %15 = arith.mulf %10, %14 : vector<16x4xf32>
    %c0_7 = arith.constant 0 : index
    %c0_8 = arith.constant 0 : index
    %16 = vector.load %arg4[%c0_7, %c0_8] : memref<16x4xf32, #tpu.memory_space<vmem>>, vector<16x4xf32>
    tpu.vector_store %arg4[%c0_7, %c0_8], %15 {strides = array<i32>} : memref<16x4xf32, #tpu.memory_space<vmem>>, vector<16x4xf32>,
    return
  }
  func.func @transform_0(%arg0: i32) -> (i32, i32) {
    %c0_i32 = arith.constant 0 : i32
    %c0_i32_0 = arith.constant 0 : i32
    return %arg0, %c0_i32 : i32, i32
  }
  func.func @transform_1(%arg0: i32) -> (i32, i32) {
    %c0_i32 = arith.constant 0 : i32
    %c0_i32_0 = arith.constant 0 : i32
    %c0_i32_1 = arith.constant 0 : i32
    return %c0_i32, %c0_i32_0 : i32, i32
  }
  func.func @transform_2(%arg0: i32) -> (i32, i32) {
    %c0_i32 = arith.constant 0 : i32
    %c0_i32_0 = arith.constant 0 : i32
    %c0_i32_1 = arith.constant 0 : i32
    return %c0_i32, %c0_i32_0 : i32, i32
  }
  func.func @transform_3(%arg0: i32) -> (i32, i32) {
    %c0_i32 = arith.constant 0 : i32
    %c0_i32_0 = arith.constant 0 : i32
    return %arg0, %c0_i32 : i32, i32
  }
}

module attributes {stable_mosaic.version = 11 : i64} {
  func.func @grouped_expert_kernel(%arg0: i32, %arg1: i32, %arg2: memref<8xi32, #tpu.memory_space<smem>>, %arg3: memref<8x32xbf16, #tpu.memory_space<vmem>>, %arg4: memref<1x32x64xbf16, #tpu.memory_space<vmem>>, %arg5: memref<1x32x64xbf16, #tpu.memory_space<vmem>>, %arg6: memref<1x64x32xbf16, #tpu.memory_space<vmem>>, %arg7: memref<8x1xf32, #tpu.memory_space<vmem>>, %arg8: memref<8x32xf32, #tpu.memory_space<vmem>>) attributes {dimension_semantics = [#tpu.dimension_semantics<parallel>, #tpu.dimension_semantics<arbitrary>], iteration_bounds = array<i64: 8, 1>, scalar_prefetch = 1 : i64, scratch_operands = 0 : i64, tpu.core_type = #tpu.core_type<tc>, window_params = [{transform_indices = @transform_0, window_bounds = array<i64: 8, 32>}, {transform_indices = @transform_1, window_bounds = array<i64: 1, 32, 64>}, {transform_indices = @transform_2, window_bounds = array<i64: 1, 32, 64>}, {transform_indices = @transform_3, window_bounds = array<i64: 1, 64, 32>}, {transform_indices = @transform_4, window_bounds = array<i64: 8, 1>}, {transform_indices = @transform_5, window_bounds = array<i64: 8, 32>}]} {
    %c0 = arith.constant 0 : index
    %c0_0 = arith.constant 0 : index
    %0 = vector.load %arg3[%c0, %c0_0] : memref<8x32xbf16, #tpu.memory_space<vmem>>, vector<8x32xbf16>
    %c0_1 = arith.constant 0 : index
    %c0_2 = arith.constant 0 : index
    %c0_3 = arith.constant 0 : index
    %1 = vector.load %arg4[%c0_1, %c0_2, %c0_3] : memref<1x32x64xbf16, #tpu.memory_space<vmem>>, vector<1x32x64xbf16>
    %2 = vector.shape_cast %1 : vector<1x32x64xbf16> to vector<32x64xbf16>
    %cst = arith.constant dense<0.000000e+00> : vector<8x64xf32>
    %3 = tpu.matmul %0, %2, %cst {dimension_numbers = #tpu.dot_dimension_numbers<[1], [0], [0], [1], [0, 0, 1, 1], [], []>} : vector<8x32xbf16>, vector<32x64xbf16>, vector<8x64xf32> -> vector<8x64xf32>
    %c0_4 = arith.constant 0 : index
    %c0_5 = arith.constant 0 : index
    %c0_6 = arith.constant 0 : index
    %4 = vector.load %arg5[%c0_4, %c0_5, %c0_6] : memref<1x32x64xbf16, #tpu.memory_space<vmem>>, vector<1x32x64xbf16>
    %5 = vector.shape_cast %4 : vector<1x32x64xbf16> to vector<32x64xbf16>
    %cst_7 = arith.constant dense<0.000000e+00> : vector<8x64xf32>
    %6 = tpu.matmul %0, %5, %cst_7 {dimension_numbers = #tpu.dot_dimension_numbers<[1], [0], [0], [1], [0, 0, 1, 1], [], []>} : vector<8x32xbf16>, vector<32x64xbf16>, vector<8x64xf32> -> vector<8x64xf32>
    %cst_8 = arith.constant 0.000000e+00 : f32
    %7 = vector.broadcast %cst_8 : f32 to vector<8x64xf32>
    %8 = arith.maximumf %3, %7 : vector<8x64xf32>
    %9 = arith.mulf %8, %8 : vector<8x64xf32>
    %10 = arith.mulf %9, %6 : vector<8x64xf32>
    %11 = arith.truncf %10 : vector<8x64xf32> to vector<8x64xbf16>
    %c0_9 = arith.constant 0 : index
    %c0_10 = arith.constant 0 : index
    %c0_11 = arith.constant 0 : index
    %12 = vector.load %arg6[%c0_9, %c0_10, %c0_11] : memref<1x64x32xbf16, #tpu.memory_space<vmem>>, vector<1x64x32xbf16>
    %13 = vector.shape_cast %12 : vector<1x64x32xbf16> to vector<64x32xbf16>
    %cst_12 = arith.constant dense<0.000000e+00> : vector<8x32xf32>
    %14 = tpu.matmul %11, %13, %cst_12 {dimension_numbers = #tpu.dot_dimension_numbers<[1], [0], [0], [1], [0, 0, 1, 1], [], []>} : vector<8x64xbf16>, vector<64x32xbf16>, vector<8x32xf32> -> vector<8x32xf32>
    %c0_i32 = arith.constant 0 : i32
    %15 = arith.cmpi eq, %arg1, %c0_i32 : i32
    %16 = arith.extui %15 : i1 to i32
    %c0_i32_13 = arith.constant 0 : i32
    %17 = arith.cmpi ne, %16, %c0_i32_13 : i32
    scf.if %17 {
      %c0_18 = arith.constant 0 : index
      %c0_19 = arith.constant 0 : index
      %24 = vector.load %arg8[%c0_18, %c0_19] : memref<8x32xf32, #tpu.memory_space<vmem>>, vector<8x32xf32>
      tpu.vector_store %arg8[%c0_18, %c0_19], %14 {strides = array<i32>} : memref<8x32xf32, #tpu.memory_space<vmem>>, vector<8x32xf32>,
    } else {
    }
    %c0_i32_14 = arith.constant 0 : i32
    %18 = arith.cmpi sgt, %arg1, %c0_i32_14 : i32
    %19 = arith.extui %18 : i1 to i32
    %c0_i32_15 = arith.constant 0 : i32
    %20 = arith.cmpi ne, %19, %c0_i32_15 : i32
    scf.if %20 {
      %c0_18 = arith.constant 0 : index
      %c0_19 = arith.constant 0 : index
      %24 = vector.load %arg8[%c0_18, %c0_19] : memref<8x32xf32, #tpu.memory_space<vmem>>, vector<8x32xf32>
      %25 = arith.addf %24, %14 : vector<8x32xf32>
      %c0_20 = arith.constant 0 : index
      %c0_21 = arith.constant 0 : index
      %26 = vector.load %arg8[%c0_20, %c0_21] : memref<8x32xf32, #tpu.memory_space<vmem>>, vector<8x32xf32>
      tpu.vector_store %arg8[%c0_20, %c0_21], %25 {strides = array<i32>} : memref<8x32xf32, #tpu.memory_space<vmem>>, vector<8x32xf32>,
    } else {
    }
    %c0_i32_16 = arith.constant 0 : i32
    %21 = arith.cmpi eq, %arg1, %c0_i32_16 : i32
    %22 = arith.extui %21 : i1 to i32
    %c0_i32_17 = arith.constant 0 : i32
    %23 = arith.cmpi ne, %22, %c0_i32_17 : i32
    scf.if %23 {
      %c0_18 = arith.constant 0 : index
      %c0_19 = arith.constant 0 : index
      %24 = vector.load %arg8[%c0_18, %c0_19] : memref<8x32xf32, #tpu.memory_space<vmem>>, vector<8x32xf32>
      %c0_20 = arith.constant 0 : index
      %c0_21 = arith.constant 0 : index
      %25 = vector.load %arg7[%c0_20, %c0_21] : memref<8x1xf32, #tpu.memory_space<vmem>>, vector<8x1xf32>
      %26 = vector.broadcast %25 : vector<8x1xf32> to vector<8x32xf32>
      %27 = arith.mulf %24, %26 : vector<8x32xf32>
      %c0_22 = arith.constant 0 : index
      %c0_23 = arith.constant 0 : index
      %28 = vector.load %arg8[%c0_22, %c0_23] : memref<8x32xf32, #tpu.memory_space<vmem>>, vector<8x32xf32>
      tpu.vector_store %arg8[%c0_22, %c0_23], %27 {strides = array<i32>} : memref<8x32xf32, #tpu.memory_space<vmem>>, vector<8x32xf32>,
    } else {
    }
    return
  }
  func.func @transform_0(%arg0: i32, %arg1: i32, %arg2: memref<8xi32, #tpu.memory_space<smem>>) -> (i32, i32) {
    %c0_i32 = arith.constant 0 : i32
    %c0_i32_0 = arith.constant 0 : i32
    return %arg0, %c0_i32 : i32, i32
  }
  func.func @transform_1(%arg0: i32, %arg1: i32, %arg2: memref<8xi32, #tpu.memory_space<smem>>) -> (i32, i32, i32) {
    %0 = arith.index_cast %arg0 : i32 to index
    %1 = memref.load %arg2[%0] : memref<8xi32, #tpu.memory_space<smem>>
    %c0_i32 = arith.constant 0 : i32
    %c0_i32_0 = arith.constant 0 : i32
    return %1, %c0_i32, %arg1 : i32, i32, i32
  }
  func.func @transform_2(%arg0: i32, %arg1: i32, %arg2: memref<8xi32, #tpu.memory_space<smem>>) -> (i32, i32, i32) {
    %0 = arith.index_cast %arg0 : i32 to index
    %1 = memref.load %arg2[%0] : memref<8xi32, #tpu.memory_space<smem>>
    %c0_i32 = arith.constant 0 : i32
    %c0_i32_0 = arith.constant 0 : i32
    return %1, %c0_i32, %arg1 : i32, i32, i32
  }
  func.func @transform_3(%arg0: i32, %arg1: i32, %arg2: memref<8xi32, #tpu.memory_space<smem>>) -> (i32, i32, i32) {
    %0 = arith.index_cast %arg0 : i32 to index
    %1 = memref.load %arg2[%0] : memref<8xi32, #tpu.memory_space<smem>>
    %c0_i32 = arith.constant 0 : i32
    %c0_i32_0 = arith.constant 0 : i32
    return %1, %arg1, %c0_i32 : i32, i32, i32
  }
  func.func @transform_4(%arg0: i32, %arg1: i32, %arg2: memref<8xi32, #tpu.memory_space<smem>>) -> (i32, i32) {
    %c0_i32 = arith.constant 0 : i32
    %c0_i32_0 = arith.constant 0 : i32
    return %arg0, %c0_i32 : i32, i32
  }
  func.func @transform_5(%arg0: i32, %arg1: i32, %arg2: memref<8xi32, #tpu.memory_space<smem>>) -> (i32, i32) {
    %c0_i32 = arith.constant 0 : i32
    %c0_i32_0 = arith.constant 0 : i32
    return %arg0, %c0_i32 : i32, i32
  }
}

</mosaic_0001>

<llo_original>
// kernel: moe_ffn_forward.2
$region0: #{moe_ffn_forward.2}
  #allocation0 [shape = 'u32[]', space=smem, size = 0x4, offset = 0x4, fixed_abs, tag = 'smem constant byte address 0x4 - core index']
  #allocation1 [shape = 'u32[144,128]{1,0:T(1,128)}', space=vmem, size = 0x12000, scoped, tag = 'internal scratch']
  %s0 = inlined_call_operand.vmem [shape: f32[16,32], index: 0, kind: input, shape index: {}]
  %s1 = inlined_call_operand.vmem [shape: f32[32,4], index: 1, kind: input, shape index: {}]
  %s2 = inlined_call_operand.vmem [shape: f32[1,4], index: 2, kind: input, shape index: {}]
  %s3 = inlined_call_operand.vmem [shape: f32[16,4], index: 3, kind: output, shape index: {}]
  %s4 = sld [smem:[#allocation0]]
  $region22: #{moe_ffn_forward.2} parent=0
    _
  %s6 = ssub.s32 1, %s4
  %s7 = scalar_select 0, %s6, %s4
  // Predicated region
  $region2: #{moe_ffn_forward.2} parent=0 // pred_check
    _
  $region3: #{moe_ffn_forward.2} parent=0 // pred_check_branch
    %9 = sbr.rel (0) target = $region5
  $region4: #{moe_ffn_forward.2} parent=0 // pred_region
    _
  $region5: #{moe_ffn_forward.2} parent=0 // pred_fallthru
    _
  // Predicated region
  $region6: #{moe_ffn_forward.2} parent=0 // pred_check
    _
  $region7: #{moe_ffn_forward.2} parent=0 // pred_check_branch
    %11 = sbr.rel (0) target = $region9
  $region8: #{moe_ffn_forward.2} parent=0 // pred_region
    _
  $region9: #{moe_ffn_forward.2} parent=0 // pred_fallthru
    _
  // Predicated region
  $region10: #{moe_ffn_forward.2} parent=0 // pred_check
    _
  $region11: #{moe_ffn_forward.2} parent=0 // pred_check_branch
    %13 = sbr.rel (0) target = $region13
  $region12: #{moe_ffn_forward.2} parent=0 // pred_region
    _
  $region13: #{moe_ffn_forward.2} parent=0 // pred_fallthru
    _
  %v14 = vld [vmem:[%s0] sm:$0xff]
  %v15 = vld [vmem:[%s0 + $0x8] sm:$0xff]
  %v16 = vld [vmem:[%s1] sm:$0xff]
  %v17 = vld [vmem:[%s1 + $0x8] sm:$0xff]
  %v18 = vld [vmem:[%s1 + $0x10] sm:$0xff]
  %v19 = vld [vmem:[%s1 + $0x18] sm:$0xff]
  %v20 = vld [vmem:[%s2] sm:$0x1]
  %v22 = vlaneseq
  %v23 = vshrl.u32 %v22, 7
  %v24 = vsub.s32 0, %v23
  %v25 = vrot.slane %v20, %v24
  %vm27 = vcmask 261120
  %v29 = vsel %vm27, %v14, 0
  %v32 = vsel %vm27, %v15, 0
  %34 = vmatprep.subr.mxu0 0.0
  %35 = vmatpush1.msra.mxu0 0.0
  %36 = vmatprep.subr.mxu0 0.0
  %37 = vmatpush1.msra.mxu0 0.0
  %38 = vmatprep.subr.mxu0 0.0
  %39 = vmatpush1.msra.mxu0 0.0
  %40 = vmatprep.subr.mxu0 0.0
  %41 = vmatpush1.msra.mxu0 0.0
  %42 = vmatprep.subr.mxu0 0.0
  %43 = vmatpush1.msra.mxu0 0.0
  %44 = vmatprep.subr.mxu0 0.0
  %45 = vmatpush1.msra.mxu0 0.0
  %46 = vmatprep.subr.mxu0 0.0
  %47 = vmatpush1.msra.mxu0 0.0
  %48 = vmatprep.subr.mxu0 0.0
  %49 = vmatpush1.msra.mxu0 0.0
  %50 = vmatprep.subr.mxu0 0.0
  %51 = vmatpush1.msra.mxu0 0.0
  %52 = vmatprep.subr.mxu0 0.0
  %53 = vmatpush1.msra.mxu0 0.0
  %54 = vmatprep.subr.mxu0 0.0
  %55 = vmatpush1.msra.mxu0 0.0
  %56 = vmatprep.subr.mxu0 0.0
  %57 = vmatpush1.msra.mxu0 0.0
  %58 = vmatprep.subr.mxu0 0.0
  %59 = vmatpush1.msra.mxu0 %v19
  %60 = vmatprep.subr.mxu0 0.0
  %61 = vmatpush1.msra.mxu0 %v18
  %62 = vmatprep.subr.mxu0 0.0
  %63 = vmatpush1.msra.mxu0 %v17
  %64 = vmatprep.subr.mxu0 0.0
  %65 = vmatpush1.msra.mxu0 %v16
  %66 = vmatprep.subr.mxu0 0.0
  %67 = vmatpush2.msra.mxu0 0.0
  %68 = vmatprep.subr.mxu0 0.0
  %69 = vmatpush2.msra.mxu0 0.0
  %70 = vmatprep.subr.mxu0 0.0
  %71 = vmatpush2.msra.mxu0 0.0
  %72 = vmatprep.subr.mxu0 0.0
  %73 = vmatpush2.msra.mxu0 0.0
  %74 = vmatprep.subr.mxu0 0.0
  %75 = vmatpush2.msra.mxu0 0.0
  %76 = vmatprep.subr.mxu0 0.0
  %77 = vmatpush2.msra.mxu0 0.0
  %78 = vmatprep.subr.mxu0 0.0
  %79 = vmatpush2.msra.mxu0 0.0
  %80 = vmatprep.subr.mxu0 0.0
  %81 = vmatpush2.msra.mxu0 0.0
  %82 = vmatprep.subr.mxu0 0.0
  %83 = vmatpush2.msra.mxu0 0.0
  %84 = vmatprep.subr.mxu0 0.0
  %85 = vmatpush2.msra.mxu0 0.0
  %86 = vmatprep.subr.mxu0 0.0
  %87 = vmatpush2.msra.mxu0 0.0
  %88 = vmatprep.subr.mxu0 0.0
  %89 = vmatpush2.msra.mxu0 0.0
  %90 = vmatprep.subr.mxu0 0.0
  %91 = vmatpush2.msra.mxu0 0.0
  %92 = vmatprep.subr.mxu0 0.0
  %93 = vmatpush2.msra.mxu0 0.0
  %94 = vmatprep.subr.mxu0 0.0
  %95 = vmatpush2.msra.mxu0 0.0
  %96 = vmatprep.subr.mxu0 0.0
  %97 = vmatpush2.msra.mxu0 0.0
  %98 = vmatprep.mubr.f32.mxu0 0.0
  %99 = vmatmul.mubr.f32.gmra.mxu0 %v29
  %v100 = vpop.f32.mrf.mxu0
  %v101 = vadd.f32 %v25, %v100
  %v102 = vpop.f32.mrf.mxu0
  %103 = vmatprep.mubr.f32.mxu0 0.0
  %104 = vmatmul.mubr.f32.gmra.mxu0 %v32
  %v105 = vpop.f32.mrf.mxu0
  %v106 = vadd.f32 %v25, %v105
  %v107 = vpop.f32.mrf.mxu0
  %108 = vdwg.mxu0
  %vm109 = vcmask 31744
  %v110 = vsel %vm109, %v101, -inf
  %111 = vmax.xlane.f32.xlu0 %v110
  %v112 = vpop.xlane.xlu0 %111
  %v113 = vsel %vm109, %v106, -inf
  %114 = vmax.xlane.f32.xlu0 %v113
  %v115 = vpop.xlane.xlu0 %114
  %v116 = vsub.f32 %v101, %v112
  %v117 = vsub.f32 %v106, %v115
  %v118 = vmul.f32 %v116, 1.442695
  %v119 = vpow.pop %v118
  %v120 = vmul.f32 %v117, 1.442695
  %v121 = vpow.pop %v120
  %v122 = vsel %vm109, %v119, 0.0
  %123 = vadd.xlane.f32.xlu0 %v122
  %v124 = vpop.xlane.xlu0 %123
  %v125 = vsel %vm109, %v121, 0.0
  %126 = vadd.xlane.f32.xlu0 %v125
  %v127 = vpop.xlane.xlu0 %126
  %v128 = vrcp.pop %v124
  %v129 = vrcp.pop %v127
  %v130 = vmul.f32 %v119, %v128
  %v131 = vmul.f32 %v121, %v129
  %132 = vst.msk [vmem:[%s3] sm:$0xff] %vm109, %v130
  %133 = vst.msk [vmem:[%s3 + $0x8] sm:$0xff] %vm109, %v131
  // Predicated region
  $region14: #{moe_ffn_forward.2} parent=0 // pred_check
    _
  $region15: #{moe_ffn_forward.2} parent=0 // pred_check_branch
    %135 = sbr.rel (0) target = $region17
  $region16: #{moe_ffn_forward.2} parent=0 // pred_region
    _
  $region17: #{moe_ffn_forward.2} parent=0 // pred_fallthru
    _
  // Predicated region
  $region18: #{moe_ffn_forward.2} parent=0 // pred_check
    _
  $region19: #{moe_ffn_forward.2} parent=0 // pred_check_branch
    %137 = sbr.rel (0) target = $region21
  $region20: #{moe_ffn_forward.2} parent=0 // pred_region
    _
  $region21: #{moe_ffn_forward.2} parent=0 // pred_fallthru
    _

// kernel: moe_ffn_forward.3
$region0: #{moe_ffn_forward.3}
  #allocation0 [shape = 'u32[]', space=smem, size = 0x4, offset = 0x4, fixed_abs, tag = 'smem constant byte address 0x4 - core index']
  #allocation1 [shape = 'u32[144,128]{1,0:T(1,128)}', space=vmem, size = 0x12000, scoped, tag = 'internal scratch']
  #allocation2 [shape = 's32[1]{0}', space=sflag, size = 0x4, scoped, tag = 'scoped memory for moe_ffn_forward.3']
  #allocation3 [shape = 'u8[512]{0}', space=smem, size = 0x200, scoped, tag = 'prefetched SMEM operand 0']
  %s0 = inlined_call_operand.vmem [shape: s32[8], index: 0, kind: input, shape index: {}]
  %s1 = inlined_call_operand.vmem [shape: bf16[64,32], index: 1, kind: input, shape index: {}]
  %s2 = inlined_call_operand.vmem [shape: bf16[4,32,64], index: 2, kind: input, shape index: {}]
  %s3 = inlined_call_operand.vmem [shape: bf16[4,32,64], index: 3, kind: input, shape index: {}]
  %s4 = inlined_call_operand.vmem [shape: bf16[4,64,32], index: 4, kind: input, shape index: {}]
  %s5 = inlined_call_operand.vmem [shape: f32[64,1], index: 5, kind: input, shape index: {}]
  %s6 = inlined_call_operand.vmem [shape: f32[64,32], index: 6, kind: output, shape index: {}]
  %s7 = sld [smem:[#allocation0]]
  $region65: #{moe_ffn_forward.3} parent=0
    _
  %s9 = ssub.s32 1, %s7
  %s10 = scalar_select 0, %s9, %s7
  %s11 = sshll.u32 %s0, 4
  %s12 = int_to_ptr.vmem [resolvable:$true] %s11
  %14 = dma.vmem_to_smem %s12, 16, [#allocation3], [#allocation2]
  %15 = dma.done [#allocation2], 16
  %16 = sfence
  loop: start=0, step=1, limit=10
  $region2: #{moe_ffn_forward.3} parent=0 // loop_pre_header
    _
  $region3: #{moe_ffn_forward.3} parent=0 // loop_header
    %s18 = sphi 0, %s22
    %p19 = scmp.ge.s32.totalorder %s18, 10
    %s25 = sphi 0, %s37
    %s26 = sphi 0, %s33
    %s27 = sphi 0, %s25
    %s28 = sphi 0, %s26
    %s29 = sphi 0, %s27
    %s30 = sphi 0, %s28
    %s40 = sphi 0, %s42
    %s43 = sphi 0, %s40
    %s44 = sphi 0, %s43
    %s60 = sphi 0, %s44
    %s70 = sphi 0, %s72
    %s73 = sphi 0, %s70
    %s74 = sphi 0, %s73
    %s90 = sphi 0, %s74
    %s100 = sphi 0, %s102
    %s103 = sphi 0, %s100
    %s104 = sphi 0, %s103
    %s120 = sphi 0, %s104
    %s130 = sphi 0, %s132
    %s133 = sphi 0, %s130
    %s134 = sphi 0, %s133
    %s150 = sphi 0, %s134
    %s156 = sphi 0, %s158
    %s159 = sphi 0, %s156
    %s160 = sphi 0, %s159
    %s176 = sphi 0, %s160
    %s182 = sphi 0, %s184
    %s185 = sphi 0, %s182
    %s186 = sphi 0, %s185
    %s202 = sphi 0, %s186
  $region4: #{moe_ffn_forward.3} parent=0 // loop_header_branch
    %21 = sbr.rel (%p19) target = $region8
  $region5: #{moe_ffn_forward.3} parent=0 // loop_body
    %s23 = ssub.s32 %s18, 1
    %s24 = ssub.s32 %s18, 2
    %s31 = sadd.s32 1, %s26
    %p32 = scmp.ge.s32.totalorder %s31, 1
    %s33 = scalar_select %p32, 0, %s31
    %s34 = sadd.s32 1, %s25
    %s35 = scalar_select %p32, %s34, %s25
    %p36 = scmp.ge.s32.totalorder %s35, 8
    %s37 = scalar_select %p36, 0, %s35
    %s38 = ssub.s32 %s25, %s37
    %p39 = scmp.eq.s32.totalorder %s38, 0
    %s41 = sadd.s32 %s40, 1
    %s42 = scalar_select %p39, %s40, %s41
    %p45 = pneg %p39
    %p46 = scmp.eq.s32.totalorder %s18, 7
    %p47 = por %p45, %p46
    %p48 = scmp.ne.s32.totalorder %s40, %s43
    %p49 = scmp.eq.s32.totalorder %s18, 0
    %p50 = por %p48, %p49
    %p51 = scmp.ne.s32.totalorder %s40, %s43
    %p52 = scmp.eq.s32.totalorder %s23, 7
    %p53 = por %p51, %p52
    %p54 = scmp.ne.s32.totalorder %s43, %s44
    %p55 = scmp.eq.s32.totalorder %s23, 0
    %p56 = por %p54, %p55
    %p57 = scmp.ne.s32.totalorder %s43, %s44
    %p58 = scmp.eq.s32.totalorder %s24, 7
    %p59 = por %p57, %p58
    %p61 = scmp.ne.s32.totalorder %s44, %s60
    %p62 = scmp.eq.s32.totalorder %s24, 0
    %p63 = por %p61, %p62
    %s64 = sld [smem:[#allocation3 + %s25]]
    %s65 = sld [smem:[#allocation3 + %s37]]
    %s66 = ssub.s32 %s64, %s65
    %s67 = ssub.s32 %s26, %s33
    %s68 = sor.u32 %s66, %s67
    %p69 = scmp.eq.s32.totalorder %s68, 0
    %s71 = sadd.s32 %s70, 1
    %s72 = scalar_select %p69, %s70, %s71
    %p75 = pneg %p69
    %p76 = scmp.eq.s32.totalorder %s18, 7
    %p77 = por %p75, %p76
    %p78 = scmp.ne.s32.totalorder %s70, %s73
    %p79 = scmp.eq.s32.totalorder %s18, 0
    %p80 = por %p78, %p79
    %p81 = scmp.ne.s32.totalorder %s70, %s73
    %p82 = scmp.eq.s32.totalorder %s23, 7
    %p83 = por %p81, %p82
    %p84 = scmp.ne.s32.totalorder %s73, %s74
    %p85 = scmp.eq.s32.totalorder %s23, 0
    %p86 = por %p84, %p85
    %p87 = scmp.ne.s32.totalorder %s73, %s74
    %p88 = scmp.eq.s32.totalorder %s24, 7
    %p89 = por %p87, %p88
    %p91 = scmp.ne.s32.totalorder %s74, %s90
    %p92 = scmp.eq.s32.totalorder %s24, 0
    %p93 = por %p91, %p92
    %s94 = sld [smem:[#allocation3 + %s25]]
    %s95 = sld [smem:[#allocation3 + %s37]]
    %s96 = ssub.s32 %s94, %s95
    %s97 = ssub.s32 %s26, %s33
    %s98 = sor.u32 %s96, %s97
    %p99 = scmp.eq.s32.totalorder %s98, 0
    %s101 = sadd.s32 %s100, 1
    %s102 = scalar_select %p99, %s100, %s101
    %p105 = pneg %p99
    %p106 = scmp.eq.s32.totalorder %s18, 7
    %p107 = por %p105, %p106
    %p108 = scmp.ne.s32.totalorder %s100, %s103
    %p109 = scmp.eq.s32.totalorder %s18, 0
    %p110 = por %p108, %p109
    %p111 = scmp.ne.s32.totalorder %s100, %s103
    %p112 = scmp.eq.s32.totalorder %s23, 7
    %p113 = por %p111, %p112
    %p114 = scmp.ne.s32.totalorder %s103, %s104
    %p115 = scmp.eq.s32.totalorder %s23, 0
    %p116 = por %p114, %p115
    %p117 = scmp.ne.s32.totalorder %s103, %s104
    %p118 = scmp.eq.s32.totalorder %s24, 7
    %p119 = por %p117, %p118
    %p121 = scmp.ne.s32.totalorder %s104, %s120
    %p122 = scmp.eq.s32.totalorder %s24, 0
    %p123 = por %p121, %p122
    %s124 = sld [smem:[#allocation3 + %s25]]
    %s125 = sld [smem:[#allocation3 + %s37]]
    %s126 = ssub.s32 %s124, %s125
    %s127 = ssub.s32 %s26, %s33
    %s128 = sor.u32 %s126, %s127
    %p129 = scmp.eq.s32.totalorder %s128, 0
    %s131 = sadd.s32 %s130, 1
    %s132 = scalar_select %p129, %s130, %s131
    %p135 = pneg %p129
    %p136 = scmp.eq.s32.totalorder %s18, 7
    %p137 = por %p135, %p136
    %p138 = scmp.ne.s32.totalorder %s130, %s133
    %p139 = scmp.eq.s32.totalorder %s18, 0
    %p140 = por %p138, %p139
    %p141 = scmp.ne.s32.totalorder %s130, %s133
    %p142 = scmp.eq.s32.totalorder %s23, 7
    %p143 = por %p141, %p142
    %p144 = scmp.ne.s32.totalorder %s133, %s134
    %p145 = scmp.eq.s32.totalorder %s23, 0
    %p146 = por %p144, %p145
    %p147 = scmp.ne.s32.totalorder %s133, %s134
    %p148 = scmp.eq.s32.totalorder %s24, 7
    %p149 = por %p147, %p148
    %p151 = scmp.ne.s32.totalorder %s134, %s150
    %p152 = scmp.eq.s32.totalorder %s24, 0
    %p153 = por %p151, %p152
    %s154 = ssub.s32 %s25, %s37
    %p155 = scmp.eq.s32.totalorder %s154, 0
    %s157 = sadd.s32 %s156, 1
    %s158 = scalar_select %p155, %s156, %s157
    %p161 = pneg %p155
    %p162 = scmp.eq.s32.totalorder %s18, 7
    %p163 = por %p161, %p162
    %p164 = scmp.ne.s32.totalorder %s156, %s159
    %p165 = scmp.eq.s32.totalorder %s18, 0
    %p166 = por %p164, %p165
    %p167 = scmp.ne.s32.totalorder %s156, %s159
    %p168 = scmp.eq.s32.totalorder %s23, 7
    %p169 = por %p167, %p168
    %p170 = scmp.ne.s32.totalorder %s159, %s160
    %p171 = scmp.eq.s32.totalorder %s23, 0
    %p172 = por %p170, %p171
    %p173 = scmp.ne.s32.totalorder %s159, %s160
    %p174 = scmp.eq.s32.totalorder %s24, 7
    %p175 = por %p173, %p174
    %p177 = scmp.ne.s32.totalorder %s160, %s176
    %p178 = scmp.eq.s32.totalorder %s24, 0
    %p179 = por %p177, %p178
    %s180 = ssub.s32 %s25, %s37
    %p181 = scmp.eq.s32.totalorder %s180, 0
    %s183 = sadd.s32 %s182, 1
    %s184 = scalar_select %p181, %s182, %s183
    %p187 = pneg %p181
    %p188 = scmp.eq.s32.totalorder %s18, 7
    %p189 = por %p187, %p188
    %p190 = scmp.ne.s32.totalorder %s182, %s185
    %p191 = scmp.eq.s32.totalorder %s18, 0
    %p192 = por %p190, %p191
    %p193 = scmp.ne.s32.totalorder %s182, %s185
    %p194 = scmp.eq.s32.totalorder %s23, 7
    %p195 = por %p193, %p194
    %p196 = scmp.ne.s32.totalorder %s185, %s186
    %p197 = scmp.eq.s32.totalorder %s23, 0
    %p198 = por %p196, %p197
    %p199 = scmp.ne.s32.totalorder %s185, %s186
    %p200 = scmp.eq.s32.totalorder %s24, 7
    %p201 = por %p199, %p200
    %p203 = scmp.ne.s32.totalorder %s186, %s202
    %p204 = scmp.eq.s32.totalorder %s24, 0
    %p205 = por %p203, %p204
    %p206 = scmp.le.s32.totalorder 1, %s18
    %p207 = scmp.lt.s32.totalorder %s18, 9
    %p208 = pnand %p206, %p207
    %p209 = pneg %p208
    // Predicated region
    $region9: #{moe_ffn_forward.3} parent=5 // pred_check
      _
    $region10: #{moe_ffn_forward.3} parent=5 // pred_check_branch
      %211 = sbr.rel (%p208) target = $region12
    $region11: #{moe_ffn_forward.3} parent=5 // pred_region
      %s212 = ssub.s32 %s18, 1
    $region12: #{moe_ffn_forward.3} parent=5 // pred_fallthru
      _
    %p213 = scmp.lt.s32.totalorder %s18, 8
    // Predicated region
    $region13: #{moe_ffn_forward.3} parent=5 // pred_check
      %p214 = pneg %p213
    $region14: #{moe_ffn_forward.3} parent=5 // pred_check_branch
      %216 = sbr.rel (%p214) target = $region16
    $region15: #{moe_ffn_forward.3} parent=5 // pred_region
      // Predicated region
      $region17: #{moe_ffn_forward.3} parent=15 // pred_check
        %p217 = pneg %p50
      $region18: #{moe_ffn_forward.3} parent=15 // pred_check_branch
        %219 = sbr.rel (%p217) target = $region20
      $region19: #{moe_ffn_forward.3} parent=15 // pred_region
        %p220 = scmp.lt.s32.totalorder %s25, 7
        %s221 = scalar_select %p220, %s25, 7
        %s222 = smul.addr %s221, 4
        %s223 = scalar_lea.vmem %s1, %s222
      $region20: #{moe_ffn_forward.3} parent=15 // pred_fallthru
        _
      // Predicated region
      $region21: #{moe_ffn_forward.3} parent=15 // pred_check
        %p224 = pneg %p80
      $region22: #{moe_ffn_forward.3} parent=15 // pred_check_branch
        %226 = sbr.rel (%p224) target = $region24
      $region23: #{moe_ffn_forward.3} parent=15 // pred_region
        %s227 = sld [smem:[#allocation3 + %s25]]
        %p228 = scmp.lt.s32.totalorder %s227, 3
        %s229 = scalar_select %p228, %s227, 3
        %p230 = scmp.lt.s32.totalorder %s26, 0
        %s231 = scalar_select %p230, %s26, 0
        %s232 = smul.addr %s229, 4
        %s233 = sadd.s32 %s231, %s232
        %s234 = smul.addr %s233, 4
        %s235 = scalar_lea.vmem %s2, %s234
        %s236 = sld [smem:[#allocation3 + %s25]]
      $region24: #{moe_ffn_forward.3} parent=15 // pred_fallthru
        _
      // Predicated region
      $region25: #{moe_ffn_forward.3} parent=15 // pred_check
        %p237 = pneg %p110
      $region26: #{moe_ffn_forward.3} parent=15 // pred_check_branch
        %239 = sbr.rel (%p237) target = $region28
      $region27: #{moe_ffn_forward.3} parent=15 // pred_region
        %s240 = sld [smem:[#allocation3 + %s25]]
        %p241 = scmp.lt.s32.totalorder %s240, 3
        %s242 = scalar_select %p241, %s240, 3
        %p243 = scmp.lt.s32.totalorder %s26, 0
        %s244 = scalar_select %p243, %s26, 0
        %s245 = smul.addr %s242, 4
        %s246 = sadd.s32 %s244, %s245
        %s247 = smul.addr %s246, 4
        %s248 = scalar_lea.vmem %s3, %s247
        %s249 = sld [smem:[#allocation3 + %s25]]
      $region28: #{moe_ffn_forward.3} parent=15 // pred_fallthru
        _
      // Predicated region
      $region29: #{moe_ffn_forward.3} parent=15 // pred_check
        %p250 = pneg %p140
      $region30: #{moe_ffn_forward.3} parent=15 // pred_check_branch
        %252 = sbr.rel (%p250) target = $region32
      $region31: #{moe_ffn_forward.3} parent=15 // pred_region
        %s253 = sld [smem:[#allocation3 + %s25]]
        %s254 = smul.u32 8, %s26
        %p255 = scmp.lt.s32.totalorder %s253, 3
        %s256 = scalar_select %p255, %s253, 3
        %p257 = scmp.lt.s32.totalorder %s254, 7
        %s258 = scalar_select %p257, %s254, 7
        %s259 = smul.addr %s256, 8
        %s260 = sadd.s32 %s258, %s259
        %s261 = smul.addr %s260, 4
        %s262 = scalar_lea.vmem %s4, %s261
        %s263 = sld [smem:[#allocation3 + %s25]]
        %s264 = smul.u32 8, %s26
      $region32: #{moe_ffn_forward.3} parent=15 // pred_fallthru
        _
      // Predicated region
      $region33: #{moe_ffn_forward.3} parent=15 // pred_check
        %p265 = pneg %p166
      $region34: #{moe_ffn_forward.3} parent=15 // pred_check_branch
        %267 = sbr.rel (%p265) target = $region36
      $region35: #{moe_ffn_forward.3} parent=15 // pred_region
        %p268 = scmp.lt.s32.totalorder %s25, 7
        %s269 = scalar_select %p268, %s25, 7
        %s270 = smul.addr %s269, 8
        %s271 = scalar_lea.vmem %s5, %s270
      $region36: #{moe_ffn_forward.3} parent=15 // pred_fallthru
        _
    $region16: #{moe_ffn_forward.3} parent=5 // pred_fallthru
      _
    %p272 = scmp.le.s32.totalorder 1, %s18
    %p273 = scmp.lt.s32.totalorder %s18, 9
    %p274 = pnand %p272, %p273
    %p275 = pneg %p274
    // Predicated region
    $region37: #{moe_ffn_forward.3} parent=5 // pred_check
      _
    $region38: #{moe_ffn_forward.3} parent=5 // pred_check_branch
      %277 = sbr.rel (%p274) target = $region40
    $region39: #{moe_ffn_forward.3} parent=5 // pred_region
      %s278 = ssub.s32 %s18, 1
      %p279 = scmp.lt.s32.totalorder %s27, 7
      %s280 = scalar_select %p279, %s27, 7
      %s281 = smul.addr %s280, 4
      %s282 = scalar_lea.vmem %s1, %s281
      %p283 = pneg %p56
      %p284 = pneg %p53
      %s285 = sld [smem:[#allocation3 + %s27]]
      %p286 = scmp.lt.s32.totalorder %s285, 3
      %s287 = scalar_select %p286, %s285, 3
      %p288 = scmp.lt.s32.totalorder %s28, 0
      %s289 = scalar_select %p288, %s28, 0
      %s290 = smul.addr %s287, 4
      %s291 = sadd.s32 %s289, %s290
      %s292 = smul.addr %s291, 4
      %s293 = scalar_lea.vmem %s2, %s292
      %p294 = pneg %p86
      %p295 = pneg %p83
      %s296 = sld [smem:[#allocation3 + %s27]]
      %p297 = scmp.lt.s32.totalorder %s296, 3
      %s298 = scalar_select %p297, %s296, 3
      %p299 = scmp.lt.s32.totalorder %s28, 0
      %s300 = scalar_select %p299, %s28, 0
      %s301 = smul.addr %s298, 4
      %s302 = sadd.s32 %s300, %s301
      %s303 = smul.addr %s302, 4
      %s304 = scalar_lea.vmem %s3, %s303
      %p305 = pneg %p116
      %p306 = pneg %p113
      %s307 = sld [smem:[#allocation3 + %s27]]
      %s308 = smul.u32 8, %s28
      %p309 = scmp.lt.s32.totalorder %s307, 3
      %s310 = scalar_select %p309, %s307, 3
      %p311 = scmp.lt.s32.totalorder %s308, 7
      %s312 = scalar_select %p311, %s308, 7
      %s313 = smul.addr %s310, 8
      %s314 = sadd.s32 %s312, %s313
      %s315 = smul.addr %s314, 4
      %s316 = scalar_lea.vmem %s4, %s315
      %p317 = pneg %p146
      %p318 = pneg %p143
      %p319 = scmp.lt.s32.totalorder %s27, 7
      %s320 = scalar_select %p319, %s27, 7
      %s321 = smul.addr %s320, 8
      %s322 = scalar_lea.vmem %s5, %s321
      %p323 = pneg %p172
      %p324 = pneg %p169
      %p325 = pneg %p198
      %p326 = pneg %p195
      %p327 = scmp.lt.s32.totalorder %s27, 7
      %s328 = scalar_select %p327, %s27, 7
      %s329 = smul.addr %s328, 8
      %s330 = scalar_lea.vmem %s6, %s329
      %p331 = scmp.lt.s32.totalorder %s27, 7
      %s332 = scalar_select %p331, %s27, 7
      %s333 = smul.addr %s332, 4
      %s334 = scalar_lea.vmem %s1, %s333
      %s335 = sld [smem:[#allocation3 + %s27]]
      %p336 = scmp.lt.s32.totalorder %s335, 3
      %s337 = scalar_select %p336, %s335, 3
      %p338 = scmp.lt.s32.totalorder %s28, 0
      %s339 = scalar_select %p338, %s28, 0
      %s340 = smul.addr %s337, 4
      %s341 = sadd.s32 %s339, %s340
      %s342 = smul.addr %s341, 4
      %s343 = scalar_lea.vmem %s2, %s342
      %s344 = sld [smem:[#allocation3 + %s27]]
      %s345 = sld [smem:[#allocation3 + %s27]]
      %p346 = scmp.lt.s32.totalorder %s345, 3
      %s347 = scalar_select %p346, %s345, 3
      %p348 = scmp.lt.s32.totalorder %s28, 0
      %s349 = scalar_select %p348, %s28, 0
      %s350 = smul.addr %s347, 4
      %s351 = sadd.s32 %s349, %s350
      %s352 = smul.addr %s351, 4
      %s353 = scalar_lea.vmem %s3, %s352
      %s354 = sld [smem:[#allocation3 + %s27]]
      %s355 = sld [smem:[#allocation3 + %s27]]
      %s356 = smul.u32 8, %s28
      %p357 = scmp.lt.s32.totalorder %s355, 3
      %s358 = scalar_select %p357, %s355, 3
      %p359 = scmp.lt.s32.totalorder %s356, 7
      %s360 = scalar_select %p359, %s356, 7
      %s361 = smul.addr %s358, 8
      %s362 = sadd.s32 %s360, %s361
      %s363 = smul.addr %s362, 4
      %s364 = scalar_lea.vmem %s4, %s363
      %s365 = sld [smem:[#allocation3 + %s27]]
      %s366 = smul.u32 8, %s28
      %p367 = scmp.lt.s32.totalorder %s27, 7
      %s368 = scalar_select %p367, %s27, 7
      %s369 = smul.addr %s368, 8
      %s370 = scalar_lea.vmem %s5, %s369
      %p371 = scmp.lt.s32.totalorder %s27, 7
      %s372 = scalar_select %p371, %s27, 7
      %s373 = smul.addr %s372, 8
      %s374 = scalar_lea.vmem %s6, %s373
      %v376 = vld [vmem:[%s334] sm:$0xf]
      %v377 = vld [vmem:[%s343] sm:$0xf]
      %v378 = vld [vmem:[%s343 + $0x4] sm:$0xf]
      %v379 = vld [vmem:[%s343 + $0x8] sm:$0xf]
      %v380 = vld [vmem:[%s343 + $0xc] sm:$0xf]
      %v385 = vunpack.c.l.b16 %v377
      %v386 = vunpack.c.l.b16 %v378
      %v387 = vunpack.c.l.b16 %v379
      %v388 = vunpack.c.l.b16 %v380
      %v389 = vpack.c.b16 %v386, %v385
      %v390 = vpack.c.b16 %v388, %v387
      %vm393 = vcmask 261120
      %v395 = vsel %vm393, %v376, 0
      %397 = vmatprep.subr.bf16.mxu0 0
      %398 = vmatpush1.bf16.msra.mxu0 0
      %399 = vmatprep.subr.bf16.mxu0 0
      %400 = vmatpush1.bf16.msra.mxu0 0
      %401 = vmatprep.subr.bf16.mxu0 0
      %402 = vmatpush1.bf16.msra.mxu0 0
      %403 = vmatprep.subr.bf16.mxu0 0
      %404 = vmatpush1.bf16.msra.mxu0 0
      %405 = vmatprep.subr.bf16.mxu0 0
      %406 = vmatpush1.bf16.msra.mxu0 0
      %407 = vmatprep.subr.bf16.mxu0 0
      %408 = vmatpush1.bf16.msra.mxu0 0
      %409 = vmatprep.subr.bf16.mxu0 0
      %410 = vmatpush1.bf16.msra.mxu0 %v390
      %411 = vmatprep.subr.bf16.mxu0 0
      %412 = vmatpush1.bf16.msra.mxu0 %v389
      %413 = vmatprep.subr.bf16.mxu0 0
      %414 = vmatpush2.bf16.msra.mxu0 0
      %415 = vmatprep.subr.bf16.mxu0 0
      %416 = vmatpush2.bf16.msra.mxu0 0
      %417 = vmatprep.subr.bf16.mxu0 0
      %418 = vmatpush2.bf16.msra.mxu0 0
      %419 = vmatprep.subr.bf16.mxu0 0
      %420 = vmatpush2.bf16.msra.mxu0 0
      %421 = vmatprep.subr.bf16.mxu0 0
      %422 = vmatpush2.bf16.msra.mxu0 0
      %423 = vmatprep.subr.bf16.mxu0 0
      %424 = vmatpush2.bf16.msra.mxu0 0
      %425 = vmatprep.subr.bf16.mxu0 0
      %426 = vmatpush2.bf16.msra.mxu0 0
      %427 = vmatprep.subr.bf16.mxu0 0
      %428 = vmatpush2.bf16.msra.mxu0 0
      %429 = vmatprep.mubr.bf16.mxu0 0
      %430 = vmatmul.mubr.bf16.gmra.mxu0 %v395
      %v431 = vpop.f32.mrf.mxu0
      %v432 = vadd.f32 0.0, %v431
      %v433 = vpop.f32.mrf.mxu0
      %v434 = vpop.f32.mrf.mxu0
      %v435 = vpop.f32.mrf.mxu0
      %436 = vdwg.mxu0
      %v437 = vld [vmem:[%s353] sm:$0xf]
      %v438 = vld [vmem:[%s353 + $0x4] sm:$0xf]
      %v439 = vld [vmem:[%s353 + $0x8] sm:$0xf]
      %v440 = vld [vmem:[%s353 + $0xc] sm:$0xf]
      %v445 = vunpack.c.l.b16 %v437
      %v446 = vunpack.c.l.b16 %v438
      %v447 = vunpack.c.l.b16 %v439
      %v448 = vunpack.c.l.b16 %v440
      %v449 = vpack.c.b16 %v446, %v445
      %v450 = vpack.c.b16 %v448, %v447
      %453 = vmatprep.subr.bf16.mxu0 0
      %454 = vmatpush1.bf16.msra.mxu0 0
      %455 = vmatprep.subr.bf16.mxu0 0
      %456 = vmatpush1.bf16.msra.mxu0 0
      %457 = vmatprep.subr.bf16.mxu0 0
      %458 = vmatpush1.bf16.msra.mxu0 0
      %459 = vmatprep.subr.bf16.mxu0 0
      %460 = vmatpush1.bf16.msra.mxu0 0
      %461 = vmatprep.subr.bf16.mxu0 0
      %462 = vmatpush1.bf16.msra.mxu0 0
      %463 = vmatprep.subr.bf16.mxu0 0
      %464 = vmatpush1.bf16.msra.mxu0 0
      %465 = vmatprep.subr.bf16.mxu0 0
      %466 = vmatpush1.bf16.msra.mxu0 %v450
      %467 = vmatprep.subr.bf16.mxu0 0
      %468 = vmatpush1.bf16.msra.mxu0 %v449
      %469 = vmatprep.subr.bf16.mxu0 0
      %470 = vmatpush2.bf16.msra.mxu0 0
      %471 = vmatprep.subr.bf16.mxu0 0
      %472 = vmatpush2.bf16.msra.mxu0 0
      %473 = vmatprep.subr.bf16.mxu0 0
      %474 = vmatpush2.bf16.msra.mxu0 0
      %475 = vmatprep.subr.bf16.mxu0 0
      %476 = vmatpush2.bf16.msra.mxu0 0
      %477 = vmatprep.subr.bf16.mxu0 0
      %478 = vmatpush2.bf16.msra.mxu0 0
      %479 = vmatprep.subr.bf16.mxu0 0
      %480 = vmatpush2.bf16.msra.mxu0 0
      %481 = vmatprep.subr.bf16.mxu0 0
      %482 = vmatpush2.bf16.msra.mxu0 0
      %483 = vmatprep.subr.bf16.mxu0 0
      %484 = vmatpush2.bf16.msra.mxu0 0
      %485 = vmatprep.mubr.bf16.mxu0 0
      %486 = vmatmul.mubr.bf16.gmra.mxu0 %v395
      %v487 = vpop.f32.mrf.mxu0
      %v488 = vadd.f32 0.0, %v487
      %v489 = vpop.f32.mrf.mxu0
      %v490 = vpop.f32.mrf.mxu0
      %v491 = vpop.f32.mrf.mxu0
      %492 = vdwg.mxu0
      %v493 = vmax.f32 %v432, 0.0
      %v494 = vmul.f32 %v493, %v493
      %v495 = vmul.f32 %v494, %v488
      %v496 = vpack.c.bf16 %v495, %v495
      %v497 = vld [vmem:[%s364] sm:$0xf]
      %v498 = vld [vmem:[%s364 + $0x4] sm:$0xf]
      %v499 = vld [vmem:[%s364 + $0x8] sm:$0xf]
      %v500 = vld [vmem:[%s364 + $0xc] sm:$0xf]
      %v501 = vld [vmem:[%s364 + $0x10] sm:$0xf]
      %v502 = vld [vmem:[%s364 + $0x14] sm:$0xf]
      %v503 = vld [vmem:[%s364 + $0x18] sm:$0xf]
      %v504 = vld [vmem:[%s364 + $0x1c] sm:$0xf]
      %v513 = vunpack.c.l.b16 %v497
      %v514 = vunpack.c.l.b16 %v498
      %v515 = vunpack.c.l.b16 %v499
      %v516 = vunpack.c.l.b16 %v500
      %v517 = vunpack.c.l.b16 %v501
      %v518 = vunpack.c.l.b16 %v502
      %v519 = vunpack.c.l.b16 %v503
      %v520 = vunpack.c.l.b16 %v504
      %v521 = vpack.c.b16 %v514, %v513
      %v522 = vpack.c.b16 %v516, %v515
      %v523 = vpack.c.b16 %v518, %v517
      %v524 = vpack.c.b16 %v520, %v519
      %vm529 = vcmask 523264
      %v531 = vsel %vm529, %v496, 0
      %533 = vmatprep.subr.bf16.mxu0 0
      %534 = vmatpush1.bf16.msra.mxu0 0
      %535 = vmatprep.subr.bf16.mxu0 0
      %536 = vmatpush1.bf16.msra.mxu0 0
      %537 = vmatprep.subr.bf16.mxu0 0
      %538 = vmatpush1.bf16.msra.mxu0 0
      %539 = vmatprep.subr.bf16.mxu0 0
      %540 = vmatpush1.bf16.msra.mxu0 0
      %541 = vmatprep.subr.bf16.mxu0 0
      %542 = vmatpush1.bf16.msra.mxu0 %v524
      %543 = vmatprep.subr.bf16.mxu0 0
      %544 = vmatpush1.bf16.msra.mxu0 %v523
      %545 = vmatprep.subr.bf16.mxu0 0
      %546 = vmatpush1.bf16.msra.mxu0 %v522
      %547 = vmatprep.subr.bf16.mxu0 0
      %548 = vmatpush1.bf16.msra.mxu0 %v521
      %549 = vmatprep.subr.bf16.mxu0 0
      %550 = vmatpush2.bf16.msra.mxu0 0
      %551 = vmatprep.subr.bf16.mxu0 0
      %552 = vmatpush2.bf16.msra.mxu0 0
      %553 = vmatprep.subr.bf16.mxu0 0
      %554 = vmatpush2.bf16.msra.mxu0 0
      %555 = vmatprep.subr.bf16.mxu0 0
      %556 = vmatpush2.bf16.msra.mxu0 0
      %557 = vmatprep.subr.bf16.mxu0 0
      %558 = vmatpush2.bf16.msra.mxu0 0
      %559 = vmatprep.subr.bf16.mxu0 0
      %560 = vmatpush2.bf16.msra.mxu0 0
      %561 = vmatprep.subr.bf16.mxu0 0
      %562 = vmatpush2.bf16.msra.mxu0 0
      %563 = vmatprep.subr.bf16.mxu0 0
      %564 = vmatpush2.bf16.msra.mxu0 0
      %565 = vmatprep.mubr.bf16.mxu0 0
      %566 = vmatmul.mubr.bf16.gmra.mxu0 %v531
      %v567 = vpop.f32.mrf.mxu0
      %v568 = vadd.f32 0.0, %v567
      %v569 = vpop.f32.mrf.mxu0
      %v570 = vpop.f32.mrf.mxu0
      %v571 = vpop.f32.mrf.mxu0
      %572 = vdwg.mxu0
      %p573 = scmp.eq.s32.totalorder %s28, 0
      // Predicated region
      $region41: #{moe_ffn_forward.3} parent=39 // pred_check
        %p574 = pneg %p573
      $region42: #{moe_ffn_forward.3} parent=39 // pred_check_branch
        %576 = sbr.rel (%p574) target = $region44
      $region43: #{moe_ffn_forward.3} parent=39 // pred_region
        %577 = vst.msk [vmem:[%s374] sm:$0xff] %vm393, %v568
      $region44: #{moe_ffn_forward.3} parent=39 // pred_fallthru
        _
      %p578 = scmp.gt.s32.totalorder %s28, 0
      // Predicated region
      $region45: #{moe_ffn_forward.3} parent=39 // pred_check
        %p579 = pneg %p578
      $region46: #{moe_ffn_forward.3} parent=39 // pred_check_branch
        %581 = sbr.rel (%p579) target = $region48
      $region47: #{moe_ffn_forward.3} parent=39 // pred_region
        %v582 = vld [vmem:[%s374] sm:$0xff]
        %v583 = vadd.f32 %v582, %v568
        %584 = vst.msk [vmem:[%s374] sm:$0xff] %vm393, %v583
      $region48: #{moe_ffn_forward.3} parent=39 // pred_fallthru
        _
      // Predicated region
      $region49: #{moe_ffn_forward.3} parent=39 // pred_check
        %p585 = pneg %p573
      $region50: #{moe_ffn_forward.3} parent=39 // pred_check_branch
        %587 = sbr.rel (%p585) target = $region52
      $region51: #{moe_ffn_forward.3} parent=39 // pred_region
        %v588 = vld [vmem:[%s374] sm:$0xff]
        %v589 = vld [vmem:[%s370] sm:$0xff]
        %591 = vset.pattern.permute.xlu0 0
        %592 = vperm.xlu0 %591, %v589
        %v593 = vpop.permute.xlu0 %592
        %v595 = vmul.f32 %v588, %v593
        %596 = vst.msk [vmem:[%s374] sm:$0xff] %vm393, %v595
      $region52: #{moe_ffn_forward.3} parent=39 // pred_fallthru
        _
      %p597 = scmp.lt.s32.totalorder %s27, 7
      %s598 = scalar_select %p597, %s27, 7
      %s599 = smul.addr %s598, 8
      %s600 = scalar_lea.vmem %s6, %s599
      // Predicated region
      $region53: #{moe_ffn_forward.3} parent=39 // pred_check
        %p601 = pneg %p195
      $region54: #{moe_ffn_forward.3} parent=39 // pred_check_branch
        %603 = sbr.rel (%p601) target = $region56
      $region55: #{moe_ffn_forward.3} parent=39 // pred_region
        _
      $region56: #{moe_ffn_forward.3} parent=39 // pred_fallthru
        _
    $region40: #{moe_ffn_forward.3} parent=5 // pred_fallthru
      _
    %p604 = scmp.le.s32.totalorder 2, %s18
    // Predicated region
    $region57: #{moe_ffn_forward.3} parent=5 // pred_check
      %p605 = pneg %p604
    $region58: #{moe_ffn_forward.3} parent=5 // pred_check_branch
      %607 = sbr.rel (%p605) target = $region60
    $region59: #{moe_ffn_forward.3} parent=5 // pred_region
      %s608 = ssub.s32 %s18, 2
      // Predicated region
      $region61: #{moe_ffn_forward.3} parent=59 // pred_check
        %p609 = pneg %p201
      $region62: #{moe_ffn_forward.3} parent=59 // pred_check_branch
        %611 = sbr.rel (%p609) target = $region64
      $region63: #{moe_ffn_forward.3} parent=59 // pred_region
        %p612 = scmp.lt.s32.totalorder %s29, 7
        %s613 = scalar_select %p612, %s29, 7
        %s614 = smul.addr %s613, 8
        %s615 = scalar_lea.vmem %s6, %s614
      $region64: #{moe_ffn_forward.3} parent=59 // pred_fallthru
        _
    $region60: #{moe_ffn_forward.3} parent=5 // pred_fallthru
      _
  $region6: #{moe_ffn_forward.3} parent=0 // loop_footer
    %s22 = sadd.s32 1, %s18
  $region7: #{moe_ffn_forward.3} parent=0 // loop_footer_branch
    %17 = sbr.rel target = $region3
  $region8: #{moe_ffn_forward.3} parent=0 // loop_exit
    _

</llo_original>
